<compile_context>
chip_gen: v6e
topology: v6e:2x2x1
jax: 0.10.0
libtpu: 0.0.40
codegen_flags: <defaults>
</compile_context>

<pallas_src>
import functools

import jax
import jax.numpy as jnp
from jax.experimental import pallas as pl
from jax.experimental.pallas import tpu as pltpu


def _round_up(x, m):
    return (x + m - 1) // m * m


# -----------------------------------------------------------------------------
# Kernel
# -----------------------------------------------------------------------------
def mmoe_kernel(x_ref, b_ref, *rest, num_experts, hidden_cat, widths, out_size):
    """Fused multi-expert MLP + gating, one dense matmul per layer.

    x_ref : (TB, Kpad)        bf16  lane-concatenated modality inputs (zero pad)
    b_ref : (rows, lanes)     f32   row j = layer-j biases (row 0 also carries
                                    the gate bias in lanes [hidden_cat:+E])
    rest  : L weight slabs, then the output ref
            w[0] : (Kpad, widths[0])       bf16  block-diag expert weights with
                                                 the gate projection as extra cols
            w[j] : (E*H_j, widths[j])      f32   block-diagonal expert weights
    out   : (TB, 128)         bf16  lanes [0:E)=gate, [E:E+out)=mixed
    """
    *w_refs, out_ref = rest
    E = num_experts
    n_layers = len(w_refs)

    # ---- layer 0: single dense matmul over the lane-concatenated input ------
    a = jnp.dot(x_ref[...], w_refs[0][...], preferred_element_type=jnp.float32)
    a = a + b_ref[0:1, 0:widths[0]]                      # (TB, widths[0]) f32
    gate_logits = a[:, hidden_cat:hidden_cat + E]        # (TB, E)
    h = jnp.maximum(a[:, :hidden_cat], 0.0)              # (TB, E*H1) f32

    # ---- remaining block-diagonal layers (f32 activations / weights) --------
    expert_out = None
    for j in range(1, n_layers):
        a = jnp.dot(h, w_refs[j][...], preferred_element_type=jnp.float32)
        a = a + b_ref[j:j + 1, 0:widths[j]]
        if j < n_layers - 1:
            h = jnp.maximum(a, 0.0)
        else:
            expert_out = a                               # (TB, E*out) f32

    # ---- softmax gate (divide on the EUP slot) -------------------------------
    m = jnp.max(gate_logits, axis=1, keepdims=True)
    p = jnp.exp(gate_logits - m)
    gate = p * pl.reciprocal(jnp.sum(p, axis=1, keepdims=True), approx=True)

    # ---- weighted mixture -----------------------------------------------------
    mixed = gate[:, 0:1] * expert_out[:, 0:out_size]
    for e in range(1, E):
        mixed = mixed + gate[:, e:e + 1] * expert_out[:, e * out_size:(e + 1) * out_size]

    # ---- packed output: two direct slice stores (pad lanes left untouched) ---
    out_ref[:, 0:E] = gate.astype(out_ref.dtype)
    out_ref[:, E:E + out_size] = mixed.astype(out_ref.dtype)


# -----------------------------------------------------------------------------
# Parameter init (PyTorch-style) and block-diagonal packing for the kernel
# -----------------------------------------------------------------------------
def init_params(key, input_sizes, hidden_sizes, output_size, num_experts):
    """Uniform(+-1/sqrt(fan_in)) init; returns unfused (PyTorch-layout-like) params."""
    assert num_experts == len(input_sizes)

    def linear(k, fan_in, fan_out):
        k_w, k_b = jax.random.split(k)
        bound = 1.0 / (fan_in ** 0.5)
        w = jax.random.uniform(k_w, (fan_in, fan_out), jnp.float32, -bound, bound)
        b = jax.random.uniform(k_b, (fan_out,), jnp.float32, -bound, bound)
        return w, b

    keys = jax.random.split(key, len(input_sizes) + 1)
    experts = []
    for i, in_sz in enumerate(input_sizes):
        dims = [in_sz] + list(hidden_sizes) + [output_size]
        ks = jax.random.split(keys[i], len(dims) - 1)
        experts.append([linear(ks[j], dims[j], dims[j + 1]) for j in range(len(dims) - 1)])

    gate = linear(keys[-1], sum(input_sizes), num_experts)  # (sum_in, E), (E,)
    return experts, gate


def pack_params(experts, gate, input_dtype=jnp.bfloat16):
    """Block-diagonalize expert weights into one 2-D slab per layer.

    Layer-0 slab (bf16): rows = concatenated modality inputs (padded to 128),
    expert e's weight sits at rows [input offset of e], cols [e*H1:(e+1)*H1];
    the gate Linear becomes a dense block of extra columns. Later layers are
    block-diagonal f32 slabs. One small f32 bias slab, row per layer.
    """
    E = len(experts)
    n_layers = len(experts[0])
    input_sizes = [layers[0][0].shape[0] for layers in experts]
    k_cat = sum(input_sizes)
    k_pad = _round_up(k_cat, 128)
    hidden_dims = [experts[0][j][0].shape[1] for j in range(n_layers)]   # [..., output_size]
    gate_w, gate_b = gate

    h1 = hidden_dims[0]
    hidden_cat = E * h1
    n0 = _round_up(hidden_cat + E, 128)

    # layer-0 slab (bf16) with fused gate columns
    w0 = jnp.zeros((k_pad, n0), jnp.float32)
    row = 0
    for e in range(E):
        k_e = input_sizes[e]
        w0 = w0.at[row:row + k_e, e * h1:(e + 1) * h1].set(experts[e][0][0])
        row += k_e
    w0 = w0.at[:k_cat, hidden_cat:hidden_cat + E].set(gate_w)
    w_slabs = [w0.astype(input_dtype)]
    widths = [n0]

    # later layers: block-diagonal f32 slabs (stay VMEM-resident, tiny)
    for j in range(1, n_layers):
        in_j, out_j = E * hidden_dims[j - 1], E * hidden_dims[j]
        wj = jnp.zeros((in_j, out_j), jnp.float32)
        for e in range(E):
            wj = wj.at[e * hidden_dims[j - 1]:(e + 1) * hidden_dims[j - 1],
                       e * hidden_dims[j]:(e + 1) * hidden_dims[j]].set(experts[e][j][0])
        w_slabs.append(wj)
        widths.append(out_j)

    # bias slab (f32): row j = layer-j biases; row 0 also carries the gate bias
    rows = _round_up(n_layers, 8)
    lanes = _round_up(max(widths), 128)
    b_slab = jnp.zeros((rows, lanes), jnp.float32)
    for e in range(E):
        b_slab = b_slab.at[0, e * h1:(e + 1) * h1].set(experts[e][0][1])
    b_slab = b_slab.at[0, hidden_cat:hidden_cat + E].set(gate_b)
    for j in range(1, n_layers):
        hj = hidden_dims[j]
        for e in range(E):
            b_slab = b_slab.at[j, e * hj:(e + 1) * hj].set(experts[e][j][1])

    meta = dict(num_experts=E, input_sizes=tuple(input_sizes), k_pad=k_pad,
                hidden_cat=hidden_cat, widths=tuple(widths),
                out_size=hidden_dims[-1])
    return w_slabs, b_slab, meta


# -----------------------------------------------------------------------------
# Wrapper
# -----------------------------------------------------------------------------
def mmoe_forward(image_input, text_input, user_info_input, packed, *, tb=None):
    w_slabs, b_slab, meta = packed
    E = meta["num_experts"]
    input_sizes = meta["input_sizes"]
    k_pad = meta["k_pad"]
    hidden_cat = meta["hidden_cat"]
    widths = meta["widths"]
    out_size = meta["out_size"]
    in_dtype = w_slabs[0].dtype

    inputs = (image_input, text_input, user_info_input)
    B = image_input.shape[0]

    # batch tile: multiple of 16 (bf16 sublane packing), big for HBM roofline,
    # but >=2 grid tiles when B allows it so v7x uses both TensorCores
    if tb is None:
        if B <= 16:
            tb = 16
        else:
            tb = min(1024, _round_up(pl.cdiv(B, 2), 16))
    tb = _round_up(tb, 16)
    b_pad = _round_up(B, tb)

    # single lane-dense (b_pad, k_pad) bf16 slab: image | text | user | zero-pad
    k_cat = sum(input_sizes)
    x_cat = jnp.concatenate([a.astype(in_dtype) for a in inputs], axis=1)
    x = jnp.zeros((b_pad, k_pad), in_dtype).at[:B, :k_cat].set(x_cat)

    out_lanes = 128  # >= E + out_size; keeps the writeback one unmasked lane-dense DMA
    grid = (b_pad // tb,)

    kernel = functools.partial(mmoe_kernel, num_experts=E, hidden_cat=hidden_cat,
                               widths=widths, out_size=out_size)

    in_specs = [
        pl.BlockSpec((tb, k_pad), lambda i: (i, 0)),        # batch-tiled input slab
        pl.BlockSpec(b_slab.shape, lambda i: (0, 0)),       # resident bias slab
    ]
    in_specs += [pl.BlockSpec(w.shape, lambda i: (0, 0)) for w in w_slabs]  # resident weights

    flops = 2 * b_pad * sum(int(w.shape[0]) * int(w.shape[1]) for w in w_slabs)
    bytes_accessed = (b_pad * k_pad * 2                       # bf16 input slab
                      + b_pad * out_lanes * 2                 # bf16 packed output
                      + sum(int(w.size) * w.dtype.itemsize for w in w_slabs)
                      + int(b_slab.size) * b_slab.dtype.itemsize)

    packed_out = pl.pallas_call(
        kernel,
        out_shape=jax.ShapeDtypeStruct((b_pad, out_lanes), jnp.bfloat16),
        grid=grid,
        in_specs=in_specs,
        out_specs=pl.BlockSpec((tb, out_lanes), lambda i: (i, 0)),
        compiler_params=pltpu.CompilerParams(
            dimension_semantics=("parallel",),
            vmem_limit_bytes=24 * 1024 * 1024,
        ),
        cost_estimate=pl.CostEstimate(
            flops=flops,
            transcendentals=b_pad * (E + 1),
            bytes_accessed=bytes_accessed,
        ),
    )(x, b_slab, *w_slabs)

    gate = packed_out[:B, :E].astype(jnp.float32)
    mixed = packed_out[:B, E:E + out_size].astype(jnp.float32)
    return gate, mixed


# -----------------------------------------------------------------------------
# Pure-JAX reference (mirrors the PyTorch forward; same precision recipe as the
# kernel: bf16 inputs / layer-0 weights, f32 everywhere after)
# -----------------------------------------------------------------------------
def mmoe_reference(image_input, text_input, user_info_input, experts, gate,
                   input_dtype=jnp.bfloat16):
    inputs = [image_input, text_input, user_info_input]
    outs = []
    for e, layers in enumerate(experts):
        h = inputs[e].astype(input_dtype)
        for j, (w, bvec) in enumerate(layers):
            wj = w.astype(input_dtype) if j == 0 else w
            h = jnp.dot(h, wj, preferred_element_type=jnp.float32) + bvec
            if j < len(layers) - 1:
                h = jnp.maximum(h, 0.0)
        outs.append(h)
    expert_out = jnp.stack(outs, axis=0)             # (E, B, out)

    gate_w, gate_b = gate
    x_cat = jnp.concatenate([a.astype(input_dtype) for a in inputs], axis=1)
    logits = jnp.dot(x_cat, gate_w.astype(input_dtype),
                     preferred_element_type=jnp.float32) + gate_b
    gw = jax.nn.softmax(logits, axis=1)
    mixed = jnp.einsum("be,ebo->bo", gw, expert_out)
    return gw, mixed


if __name__ == "__main__":
    # Small shapes consistent with MMoE(input_sizes, hidden_sizes, output_size, num_experts):
    # one ExpertNetwork (Linear/ReLU MLP) per modality + softmax gating over the concat.
    input_sizes = (32, 16, 24)      # image / text / user_info feature dims
    hidden_sizes = (32, 16)
    output_size = 8
    num_experts = 3

    root = jax.random.PRNGKey(0)
    k_par, k_data = jax.random.split(root)
    experts, gate = init_params(k_par, input_sizes, hidden_sizes, output_size, num_experts)
    packed = pack_params(experts, gate, input_dtype=jnp.bfloat16)

    def run_case(batch, key):
        k_img, k_txt, k_usr = jax.random.split(key, 3)
        image_input = jax.random.normal(k_img, (batch, input_sizes[0]), jnp.float32)
        text_input = jax.random.normal(k_txt, (batch, input_sizes[1]), jnp.float32)
        user_info_input = jax.random.normal(k_usr, (batch, input_sizes[2]), jnp.float32)

        gate_w, mixed = mmoe_forward(image_input, text_input, user_info_input, packed)
        jax.block_until_ready((gate_w, mixed))

        gate_ref, mixed_ref = mmoe_reference(
            image_input, text_input, user_info_input, experts, gate, jnp.bfloat16)

        assert gate_w.shape == (batch, num_experts) and mixed.shape == (batch, output_size)
        # bf16 input/output storage + approx EUP reciprocal => slightly loose tolerance
        assert jnp.allclose(gate_w, gate_ref, atol=5e-3, rtol=5e-3), \
            float(jnp.max(jnp.abs(gate_w - gate_ref)))
        assert jnp.allclose(mixed, mixed_ref, atol=5e-3, rtol=5e-3), \
            float(jnp.max(jnp.abs(mixed - mixed_ref)))

    keys = jax.random.split(k_data, 2)
    run_case(8, keys[0])      # single-tile path
    run_case(600, keys[1])    # multi-tile grid + padded batch rows

    print("KERNEL_OK")
</pallas_src>

<mosaic_0001>
module attributes {stable_mosaic.version = 11 : i64} {
  func.func @mmoe_kernel(%arg0: i32, %arg1: memref<16x128xbf16, #tpu.memory_space<vmem>>, %arg2: memref<8x128xf32, #tpu.memory_space<vmem>>, %arg3: memref<128x128xbf16, #tpu.memory_space<vmem>>, %arg4: memref<96x48xf32, #tpu.memory_space<vmem>>, %arg5: memref<48x24xf32, #tpu.memory_space<vmem>>, %arg6: memref<16x128xbf16, #tpu.memory_space<vmem>>) attributes {dimension_semantics = [#tpu.dimension_semantics<parallel>], iteration_bounds = array<i64: 1>, scalar_prefetch = 0 : i64, scratch_operands = 0 : i64, tpu.core_type = #tpu.core_type<tc>, window_params = [{transform_indices = @transform_0, window_bounds = array<i64: 16, 128>}, {pipeline_mode = #tpu.pipeline_mode<synchronous>, transform_indices = @transform_1, window_bounds = array<i64: 8, 128>}, {pipeline_mode = #tpu.pipeline_mode<synchronous>, transform_indices = @transform_2, window_bounds = array<i64: 128, 128>}, {pipeline_mode = #tpu.pipeline_mode<synchronous>, transform_indices = @transform_3, window_bounds = array<i64: 96, 48>}, {pipeline_mode = #tpu.pipeline_mode<synchronous>, transform_indices = @transform_4, window_bounds = array<i64: 48, 24>}, {transform_indices = @transform_5, window_bounds = array<i64: 16, 128>}]} {
    %c0 = arith.constant 0 : index
    %c0_0 = arith.constant 0 : index
    %0 = vector.load %arg1[%c0, %c0_0] : memref<16x128xbf16, #tpu.memory_space<vmem>>, vector<16x128xbf16>
    %c0_1 = arith.constant 0 : index
    %c0_2 = arith.constant 0 : index
    %1 = vector.load %arg3[%c0_1, %c0_2] : memref<128x128xbf16, #tpu.memory_space<vmem>>, vector<128x128xbf16>
    %cst = arith.constant dense<0.000000e+00> : vector<16x128xf32>
    %2 = tpu.matmul %0, %1, %cst {dimension_numbers = #tpu.dot_dimension_numbers<[1], [0], [0], [1], [0, 0, 1, 1], [], []>} : vector<16x128xbf16>, vector<128x128xbf16>, vector<16x128xf32> -> vector<16x128xf32>
    %c0_3 = arith.constant 0 : index
    %c0_4 = arith.constant 0 : index
    %3 = vector.load %arg2[%c0_3, %c0_4] : memref<8x128xf32, #tpu.memory_space<vmem>>, vector<1x128xf32>
    %4 = vector.broadcast %3 : vector<1x128xf32> to vector<16x128xf32>
    %5 = arith.addf %2, %4 : vector<16x128xf32>
    %6 = vector.extract_strided_slice %5 {offsets = [0, 96], sizes = [16, 3], strides = [1, 1]} : vector<16x128xf32> to vector<16x3xf32>
    %7 = vector.extract_strided_slice %5 {offsets = [0, 0], sizes = [16, 96], strides = [1, 1]} : vector<16x128xf32> to vector<16x96xf32>
    %cst_5 = arith.constant 0.000000e+00 : f32
    %8 = vector.broadcast %cst_5 : f32 to vector<16x96xf32>
    %9 = arith.maximumf %7, %8 : vector<16x96xf32>
    %c0_6 = arith.constant 0 : index
    %c0_7 = arith.constant 0 : index
    %10 = vector.load %arg4[%c0_6, %c0_7] : memref<96x48xf32, #tpu.memory_space<vmem>>, vector<96x48xf32>
    %cst_8 = arith.constant dense<0.000000e+00> : vector<16x48xf32>
    %11 = tpu.matmul %9, %10, %cst_8 {dimension_numbers = #tpu.dot_dimension_numbers<[1], [0], [0], [1], [0, 0, 1, 1], [], []>} : vector<16x96xf32>, vector<96x48xf32>, vector<16x48xf32> -> vector<16x48xf32>
    %c1 = arith.constant 1 : index
    %c0_9 = arith.constant 0 : index
    %12 = vector.load %arg2[%c1, %c0_9] : memref<8x128xf32, #tpu.memory_space<vmem>>, vector<1x48xf32>
    %13 = vector.broadcast %12 : vector<1x48xf32> to vector<16x48xf32>
    %14 = arith.addf %11, %13 : vector<16x48xf32>
    %cst_10 = arith.constant 0.000000e+00 : f32
    %15 = vector.broadcast %cst_10 : f32 to vector<16x48xf32>
    %16 = arith.maximumf %14, %15 : vector<16x48xf32>
    %c0_11 = arith.constant 0 : index
    %c0_12 = arith.constant 0 : index
    %17 = vector.load %arg5[%c0_11, %c0_12] : memref<48x24xf32, #tpu.memory_space<vmem>>, vector<48x24xf32>
    %cst_13 = arith.constant dense<0.000000e+00> : vector<16x24xf32>
    %18 = tpu.matmul %16, %17, %cst_13 {dimension_numbers = #tpu.dot_dimension_numbers<[1], [0], [0], [1], [0, 0, 1, 1], [], []>} : vector<16x48xf32>, vector<48x24xf32>, vector<16x24xf32> -> vector<16x24xf32>
    %c2 = arith.constant 2 : index
    %c0_14 = arith.constant 0 : index
    %19 = vector.load %arg2[%c2, %c0_14] : memref<8x128xf32, #tpu.memory_space<vmem>>, vector<1x24xf32>
    %20 = vector.broadcast %19 : vector<1x24xf32> to vector<16x24xf32>
    %21 = arith.addf %18, %20 : vector<16x24xf32>
    %cst_15 = arith.constant dense<0xFF800000> : vector<16xf32>
    %22 = vector.multi_reduction <maximumf>, %6, %cst_15 [1] : vector<16x3xf32> to vector<16xf32>
    %23 = vector.shape_cast %22 : vector<16xf32> to vector<16x1xf32>
    %24 = vector.broadcast %23 : vector<16x1xf32> to vector<16x3xf32>
    %25 = arith.subf %6, %24 : vector<16x3xf32>
    %26 = math.exp %25 : vector<16x3xf32>
    %cst_16 = arith.constant dense<0.000000e+00> : vector<16xf32>
    %27 = vector.multi_reduction <add>, %26, %cst_16 [1] : vector<16x3xf32> to vector<16xf32>
    %28 = vector.shape_cast %27 : vector<16xf32> to vector<16x1xf32>
    %29 = tpu.reciprocal %28 {approx = true} : vector<16x1xf32> -> vector<16x1xf32>
    %30 = vector.broadcast %29 : vector<16x1xf32> to vector<16x3xf32>
    %31 = arith.mulf %26, %30 : vector<16x3xf32>
    %32 = vector.extract_strided_slice %31 {offsets = [0, 0], sizes = [16, 1], strides = [1, 1]} : vector<16x3xf32> to vector<16x1xf32>
    %33 = vector.extract_strided_slice %21 {offsets = [0, 0], sizes = [16, 8], strides = [1, 1]} : vector<16x24xf32> to vector<16x8xf32>
    %34 = vector.broadcast %32 : vector<16x1xf32> to vector<16x8xf32>
    %35 = arith.mulf %34, %33 : vector<16x8xf32>
    %36 = vector.extract_strided_slice %31 {offsets = [0, 1], sizes = [16, 1], strides = [1, 1]} : vector<16x3xf32> to vector<16x1xf32>
    %37 = vector.extract_strided_slice %21 {offsets = [0, 8], sizes = [16, 8], strides = [1, 1]} : vector<16x24xf32> to vector<16x8xf32>
    %38 = vector.broadcast %36 : vector<16x1xf32> to vector<16x8xf32>
    %39 = arith.mulf %38, %37 : vector<16x8xf32>
    %40 = arith.addf %35, %39 : vector<16x8xf32>
    %41 = vector.extract_strided_slice %31 {offsets = [0, 2], sizes = [16, 1], strides = [1, 1]} : vector<16x3xf32> to vector<16x1xf32>
    %42 = vector.extract_strided_slice %21 {offsets = [0, 16], sizes = [16, 8], strides = [1, 1]} : vector<16x24xf32> to vector<16x8xf32>
    %43 = vector.broadcast %41 : vector<16x1xf32> to vector<16x8xf32>
    %44 = arith.mulf %43, %42 : vector<16x8xf32>
    %45 = arith.addf %40, %44 : vector<16x8xf32>
    %46 = arith.truncf %31 : vector<16x3xf32> to vector<16x3xbf16>
    %c0_17 = arith.constant 0 : index
    %c0_18 = arith.constant 0 : index
    %47 = vector.load %arg6[%c0_17, %c0_18] : memref<16x128xbf16, #tpu.memory_space<vmem>>, vector<16x3xbf16>
    tpu.vector_store %arg6[%c0_17, %c0_18], %46 {strides = array<i32>} : memref<16x128xbf16, #tpu.memory_space<vmem>>, vector<16x3xbf16>,
    %48 = arith.truncf %45 : vector<16x8xf32> to vector<16x8xbf16>
    %c0_19 = arith.constant 0 : index
    %c3 = arith.constant 3 : index
    %49 = vector.load %arg6[%c0_19, %c3] : memref<16x128xbf16, #tpu.memory_space<vmem>>, vector<16x8xbf16>
    tpu.vector_store %arg6[%c0_19, %c3], %48 {strides = array<i32>} : memref<16x128xbf16, #tpu.memory_space<vmem>>, vector<16x8xbf16>,
    return
  }
  func.func @transform_0(%arg0: i32) -> (i32, i32) {
    %c0_i32 = arith.constant 0 : i32
    %c0_i32_0 = arith.constant 0 : i32
    return %arg0, %c0_i32 : i32, i32
  }
  func.func @transform_1(%arg0: i32) -> (i32, i32) {
    %c0_i32 = arith.constant 0 : i32
    %c0_i32_0 = arith.constant 0 : i32
    %c0_i32_1 = arith.constant 0 : i32
    return %c0_i32, %c0_i32_0 : i32, i32
  }
  func.func @transform_2(%arg0: i32) -> (i32, i32) {
    %c0_i32 = arith.constant 0 : i32
    %c0_i32_0 = arith.constant 0 : i32
    %c0_i32_1 = arith.constant 0 : i32
    return %c0_i32, %c0_i32_0 : i32, i32
  }
  func.func @transform_3(%arg0: i32) -> (i32, i32) {
    %c0_i32 = arith.constant 0 : i32
    %c0_i32_0 = arith.constant 0 : i32
    %c0_i32_1 = arith.constant 0 : i32
    return %c0_i32, %c0_i32_0 : i32, i32
  }
  func.func @transform_4(%arg0: i32) -> (i32, i32) {
    %c0_i32 = arith.constant 0 : i32
    %c0_i32_0 = arith.constant 0 : i32
    %c0_i32_1 = arith.constant 0 : i32
    return %c0_i32, %c0_i32_0 : i32, i32
  }
  func.func @transform_5(%arg0: i32) -> (i32, i32) {
    %c0_i32 = arith.constant 0 : i32
    %c0_i32_0 = arith.constant 0 : i32
    return %arg0, %c0_i32 : i32, i32
  }
}

</mosaic_0001>

<llo_original>
// kernel: tpu_custom_call.1
$region0: #{tpu_custom_call.1}
  #allocation0 [shape = 'u32[]', space=smem, size = 0x4, offset = 0x4, fixed_abs, tag = 'smem constant byte address 0x4 - core index']
  #allocation1 [shape = 'u32[144,128]{1,0:T(1,128)}', space=vmem, size = 0x12000, scoped, tag = 'internal scratch']
  %s0 = inlined_call_operand.vmem [shape: bf16[16,128], index: 0, kind: input, shape index: {}]
  %s1 = inlined_call_operand.vmem [shape: f32[8,128], index: 1, kind: input, shape index: {}]
  %s2 = inlined_call_operand.vmem [shape: bf16[128,128], index: 2, kind: input, shape index: {}]
  %s3 = inlined_call_operand.vmem [shape: f32[96,48], index: 3, kind: input, shape index: {}]
  %s4 = inlined_call_operand.vmem [shape: f32[48,24], index: 4, kind: input, shape index: {}]
  %s5 = inlined_call_operand.hbm [shape: bf16[16,128], index: 5, kind: output, shape index: {}]
  %s6 = sld [smem:[#allocation0]]
  $region30: #{tpu_custom_call.1} parent=0
    _
  %s8 = ssub.s32 1, %s6
  %s9 = scalar_select 0, %s8, %s6
  $region1: #{tpu_custom_call.1} parent=0
    #allocation2 [shape = 'u8[4096]{0}', space=vmem, size = 0x1000, scoped, tag = 'output window, operand 0, single buffered']
    #allocation3 [shape = 's32[1]{0}', space=sflag, size = 0x4, scoped, tag = 'scoped memory for tpu_custom_call.1']
    %10 = vsyncpa [#allocation3], 0
    // Predicated region
    $region2: #{tpu_custom_call.1} parent=1 // pred_check
      _
    $region3: #{tpu_custom_call.1} parent=1 // pred_check_branch
      %12 = sbr.rel (0) target = $region5
    $region4: #{tpu_custom_call.1} parent=1 // pred_region
      _
    $region5: #{tpu_custom_call.1} parent=1 // pred_fallthru
      _
    // Predicated region
    $region6: #{tpu_custom_call.1} parent=1 // pred_check
      _
    $region7: #{tpu_custom_call.1} parent=1 // pred_check_branch
      %14 = sbr.rel (0) target = $region9
    $region8: #{tpu_custom_call.1} parent=1 // pred_region
      _
    $region9: #{tpu_custom_call.1} parent=1 // pred_fallthru
      _
    // Predicated region
    $region10: #{tpu_custom_call.1} parent=1 // pred_check
      _
    $region11: #{tpu_custom_call.1} parent=1 // pred_check_branch
      %16 = sbr.rel (0) target = $region13
    $region12: #{tpu_custom_call.1} parent=1 // pred_region
      _
    $region13: #{tpu_custom_call.1} parent=1 // pred_fallthru
      _
    // Predicated region
    $region14: #{tpu_custom_call.1} parent=1 // pred_check
      _
    $region15: #{tpu_custom_call.1} parent=1 // pred_check_branch
      %18 = sbr.rel (0) target = $region17
    $region16: #{tpu_custom_call.1} parent=1 // pred_region
      _
    $region17: #{tpu_custom_call.1} parent=1 // pred_fallthru
      _
    // Predicated region
    $region18: #{tpu_custom_call.1} parent=1 // pred_check
      _
    $region19: #{tpu_custom_call.1} parent=1 // pred_check_branch
      %20 = sbr.rel (0) target = $region21
    $region20: #{tpu_custom_call.1} parent=1 // pred_region
      _
    $region21: #{tpu_custom_call.1} parent=1 // pred_fallthru
      _
    %v22 = vld [vmem:[%s0] sm:$0xf]
    %v23 = vld [vmem:[%s0 + $0x4] sm:$0xf]
    %v24 = vld [vmem:[%s2] sm:$0xf]
    %v25 = vld [vmem:[%s2 + $0x4] sm:$0xf]
    %v26 = vld [vmem:[%s2 + $0x8] sm:$0xf]
    %v27 = vld [vmem:[%s2 + $0xc] sm:$0xf]
    %v28 = vld [vmem:[%s2 + $0x10] sm:$0xf]
    %v29 = vld [vmem:[%s2 + $0x14] sm:$0xf]
    %v30 = vld [vmem:[%s2 + $0x18] sm:$0xf]
    %v31 = vld [vmem:[%s2 + $0x1c] sm:$0xf]
    %v32 = vld [vmem:[%s2 + $0x20] sm:$0xf]
    %v33 = vld [vmem:[%s2 + $0x24] sm:$0xf]
    %v34 = vld [vmem:[%s2 + $0x28] sm:$0xf]
    %v35 = vld [vmem:[%s2 + $0x2c] sm:$0xf]
    %v36 = vld [vmem:[%s2 + $0x30] sm:$0xf]
    %v37 = vld [vmem:[%s2 + $0x34] sm:$0xf]
    %v38 = vld [vmem:[%s2 + $0x38] sm:$0xf]
    %v39 = vld [vmem:[%s2 + $0x3c] sm:$0xf]
    %v40 = vld [vmem:[%s1] sm:$0x1]
    %v41 = vlaneseq
    %v42 = vshrl.u32 %v41, 7
    %v43 = vsub.s32 0, %v42
    %v44 = vrot.slane %v40, %v43
    %v47 = vunpack.c.l.b16 %v22
    %v48 = vunpack.c.l.b16 %v23
    %v49 = vpack.c.b16 %v48, %v47
    %v67 = vunpack.c.l.b16 %v24
    %v68 = vunpack.c.l.b16 %v25
    %v69 = vunpack.c.l.b16 %v26
    %v70 = vunpack.c.l.b16 %v27
    %v71 = vunpack.c.l.b16 %v28
    %v72 = vunpack.c.l.b16 %v29
    %v73 = vunpack.c.l.b16 %v30
    %v74 = vunpack.c.l.b16 %v31
    %v75 = vunpack.c.l.b16 %v32
    %v76 = vunpack.c.l.b16 %v33
    %v77 = vunpack.c.l.b16 %v34
    %v78 = vunpack.c.l.b16 %v35
    %v79 = vunpack.c.l.b16 %v36
    %v80 = vunpack.c.l.b16 %v37
    %v81 = vunpack.c.l.b16 %v38
    %v82 = vunpack.c.l.b16 %v39
    %v83 = vpack.c.b16 %v68, %v67
    %v84 = vpack.c.b16 %v70, %v69
    %v85 = vpack.c.b16 %v72, %v71
    %v86 = vpack.c.b16 %v74, %v73
    %v87 = vpack.c.b16 %v76, %v75
    %v88 = vpack.c.b16 %v78, %v77
    %v89 = vpack.c.b16 %v80, %v79
    %v90 = vpack.c.b16 %v82, %v81
    %99 = vmatprep.subr.bf16.mxu0 0
    %100 = vmatpush1.bf16.msra.mxu0 %v90
    %101 = vmatprep.subr.bf16.mxu0 0
    %102 = vmatpush1.bf16.msra.mxu0 %v89
    %103 = vmatprep.subr.bf16.mxu0 0
    %104 = vmatpush1.bf16.msra.mxu0 %v88
    %105 = vmatprep.subr.bf16.mxu0 0
    %106 = vmatpush1.bf16.msra.mxu0 %v87
    %107 = vmatprep.subr.bf16.mxu0 0
    %108 = vmatpush1.bf16.msra.mxu0 %v86
    %109 = vmatprep.subr.bf16.mxu0 0
    %110 = vmatpush1.bf16.msra.mxu0 %v85
    %111 = vmatprep.subr.bf16.mxu0 0
    %112 = vmatpush1.bf16.msra.mxu0 %v84
    %113 = vmatprep.subr.bf16.mxu0 0
    %114 = vmatpush1.bf16.msra.mxu0 %v83
    %115 = vmatprep.subr.bf16.mxu0 0
    %116 = vmatpush2.bf16.msra.mxu0 0
    %117 = vmatprep.subr.bf16.mxu0 0
    %118 = vmatpush2.bf16.msra.mxu0 0
    %119 = vmatprep.subr.bf16.mxu0 0
    %120 = vmatpush2.bf16.msra.mxu0 0
    %121 = vmatprep.subr.bf16.mxu0 0
    %122 = vmatpush2.bf16.msra.mxu0 0
    %123 = vmatprep.subr.bf16.mxu0 0
    %124 = vmatpush2.bf16.msra.mxu0 0
    %125 = vmatprep.subr.bf16.mxu0 0
    %126 = vmatpush2.bf16.msra.mxu0 0
    %127 = vmatprep.subr.bf16.mxu0 0
    %128 = vmatpush2.bf16.msra.mxu0 0
    %129 = vmatprep.subr.bf16.mxu0 0
    %130 = vmatpush2.bf16.msra.mxu0 0
    %131 = vmatprep.mubr.bf16.mxu0 0
    %132 = vmatmul.mubr.bf16.gmra.mxu0 %v49
    %v133 = vpop.f32.mrf.mxu0
    %v134 = vadd.f32 %v44, %v133
    %v135 = vpop.f32.mrf.mxu0
    %v136 = vpop.f32.mrf.mxu0
    %v137 = vadd.f32 %v44, %v136
    %v138 = vpop.f32.mrf.mxu0
    %139 = vdwg.mxu0
    %v140 = vmax.f32 %v134, 0.0
    %v141 = vmax.f32 %v137, 0.0
    %v142 = vld [vmem:[%s3] sm:$0xff]
    %v143 = vld [vmem:[%s3 + $0x8] sm:$0xff]
    %v144 = vld [vmem:[%s3 + $0x10] sm:$0xff]
    %v145 = vld [vmem:[%s3 + $0x18] sm:$0xff]
    %v146 = vld [vmem:[%s3 + $0x20] sm:$0xff]
    %v147 = vld [vmem:[%s3 + $0x28] sm:$0xff]
    %v148 = vld [vmem:[%s3 + $0x30] sm:$0xff]
    %v149 = vld [vmem:[%s3 + $0x38] sm:$0xff]
    %v150 = vld [vmem:[%s3 + $0x40] sm:$0xff]
    %v151 = vld [vmem:[%s3 + $0x48] sm:$0xff]
    %v152 = vld [vmem:[%s3 + $0x50] sm:$0xff]
    %v153 = vld [vmem:[%s3 + $0x58] sm:$0xff]
    %v154 = vld [vmem:[%s1 + $0x1] sm:$0x1]
    %v155 = vlaneseq
    %v156 = vshrl.u32 %v155, 7
    %v157 = vsub.s32 0, %v156
    %v158 = vrot.slane %v154, %v157
    %vm159 = vcmask 785408
    %v161 = vsel %vm159, %v140, 0
    %v164 = vsel %vm159, %v141, 0
    %166 = vmatprep.subr.mxu0 0.0
    %167 = vmatpush1.msra.mxu0 0.0
    %168 = vmatprep.subr.mxu0 0.0
    %169 = vmatpush1.msra.mxu0 0.0
    %170 = vmatprep.subr.mxu0 0.0
    %171 = vmatpush1.msra.mxu0 0.0
    %172 = vmatprep.subr.mxu0 0.0
    %173 = vmatpush1.msra.mxu0 0.0
    %174 = vmatprep.subr.mxu0 0.0
    %175 = vmatpush1.msra.mxu0 %v153
    %176 = vmatprep.subr.mxu0 0.0
    %177 = vmatpush1.msra.mxu0 %v152
    %178 = vmatprep.subr.mxu0 0.0
    %179 = vmatpush1.msra.mxu0 %v151
    %180 = vmatprep.subr.mxu0 0.0
    %181 = vmatpush1.msra.mxu0 %v150
    %182 = vmatprep.subr.mxu0 0.0
    %183 = vmatpush1.msra.mxu0 %v149
    %184 = vmatprep.subr.mxu0 0.0
    %185 = vmatpush1.msra.mxu0 %v148
    %186 = vmatprep.subr.mxu0 0.0
    %187 = vmatpush1.msra.mxu0 %v147
    %188 = vmatprep.subr.mxu0 0.0
    %189 = vmatpush1.msra.mxu0 %v146
    %190 = vmatprep.subr.mxu0 0.0
    %191 = vmatpush1.msra.mxu0 %v145
    %192 = vmatprep.subr.mxu0 0.0
    %193 = vmatpush1.msra.mxu0 %v144
    %194 = vmatprep.subr.mxu0 0.0
    %195 = vmatpush1.msra.mxu0 %v143
    %196 = vmatprep.subr.mxu0 0.0
    %197 = vmatpush1.msra.mxu0 %v142
    %198 = vmatprep.subr.mxu0 0.0
    %199 = vmatpush2.msra.mxu0 0.0
    %200 = vmatprep.subr.mxu0 0.0
    %201 = vmatpush2.msra.mxu0 0.0
    %202 = vmatprep.subr.mxu0 0.0
    %203 = vmatpush2.msra.mxu0 0.0
    %204 = vmatprep.subr.mxu0 0.0
    %205 = vmatpush2.msra.mxu0 0.0
    %206 = vmatprep.subr.mxu0 0.0
    %207 = vmatpush2.msra.mxu0 0.0
    %208 = vmatprep.subr.mxu0 0.0
    %209 = vmatpush2.msra.mxu0 0.0
    %210 = vmatprep.subr.mxu0 0.0
    %211 = vmatpush2.msra.mxu0 0.0
    %212 = vmatprep.subr.mxu0 0.0
    %213 = vmatpush2.msra.mxu0 0.0
    %214 = vmatprep.subr.mxu0 0.0
    %215 = vmatpush2.msra.mxu0 0.0
    %216 = vmatprep.subr.mxu0 0.0
    %217 = vmatpush2.msra.mxu0 0.0
    %218 = vmatprep.subr.mxu0 0.0
    %219 = vmatpush2.msra.mxu0 0.0
    %220 = vmatprep.subr.mxu0 0.0
    %221 = vmatpush2.msra.mxu0 0.0
    %222 = vmatprep.subr.mxu0 0.0
    %223 = vmatpush2.msra.mxu0 0.0
    %224 = vmatprep.subr.mxu0 0.0
    %225 = vmatpush2.msra.mxu0 0.0
    %226 = vmatprep.subr.mxu0 0.0
    %227 = vmatpush2.msra.mxu0 0.0
    %228 = vmatprep.subr.mxu0 0.0
    %229 = vmatpush2.msra.mxu0 0.0
    %230 = vmatprep.mubr.f32.mxu0 0.0
    %231 = vmatmul.mubr.f32.gmra.mxu0 %v161
    %v232 = vpop.f32.mrf.mxu0
    %v233 = vadd.f32 %v158, %v232
    %v234 = vpop.f32.mrf.mxu0
    %235 = vmatprep.mubr.f32.mxu0 0.0
    %236 = vmatmul.mubr.f32.gmra.mxu0 %v164
    %v237 = vpop.f32.mrf.mxu0
    %v238 = vadd.f32 %v158, %v237
    %v239 = vpop.f32.mrf.mxu0
    %240 = vdwg.mxu0
    %v241 = vmax.f32 %v233, 0.0
    %v242 = vmax.f32 %v238, 0.0
    %v243 = vld [vmem:[%s4] sm:$0xff]
    %v244 = vld [vmem:[%s4 + $0x8] sm:$0xff]
    %v245 = vld [vmem:[%s4 + $0x10] sm:$0xff]
    %v246 = vld [vmem:[%s4 + $0x18] sm:$0xff]
    %v247 = vld [vmem:[%s4 + $0x20] sm:$0xff]
    %v248 = vld [vmem:[%s4 + $0x28] sm:$0xff]
    %v249 = vld [vmem:[%s1 + $0x2] sm:$0x1]
    %v250 = vlaneseq
    %v251 = vshrl.u32 %v250, 7
    %v252 = vsub.s32 0, %v251
    %v253 = vrot.slane %v249, %v252
    %vm254 = vcmask 392192
    %v256 = vsel %vm254, %v241, 0
    %v259 = vsel %vm254, %v242, 0
    %261 = vmatprep.subr.mxu0 0.0
    %262 = vmatpush1.msra.mxu0 0.0
    %263 = vmatprep.subr.mxu0 0.0
    %264 = vmatpush1.msra.mxu0 0.0
    %265 = vmatprep.subr.mxu0 0.0
    %266 = vmatpush1.msra.mxu0 0.0
    %267 = vmatprep.subr.mxu0 0.0
    %268 = vmatpush1.msra.mxu0 0.0
    %269 = vmatprep.subr.mxu0 0.0
    %270 = vmatpush1.msra.mxu0 0.0
    %271 = vmatprep.subr.mxu0 0.0
    %272 = vmatpush1.msra.mxu0 0.0
    %273 = vmatprep.subr.mxu0 0.0
    %274 = vmatpush1.msra.mxu0 0.0
    %275 = vmatprep.subr.mxu0 0.0
    %276 = vmatpush1.msra.mxu0 0.0
    %277 = vmatprep.subr.mxu0 0.0
    %278 = vmatpush1.msra.mxu0 0.0
    %279 = vmatprep.subr.mxu0 0.0
    %280 = vmatpush1.msra.mxu0 0.0
    %281 = vmatprep.subr.mxu0 0.0
    %282 = vmatpush1.msra.mxu0 %v248
    %283 = vmatprep.subr.mxu0 0.0
    %284 = vmatpush1.msra.mxu0 %v247
    %285 = vmatprep.subr.mxu0 0.0
    %286 = vmatpush1.msra.mxu0 %v246
    %287 = vmatprep.subr.mxu0 0.0
    %288 = vmatpush1.msra.mxu0 %v245
    %289 = vmatprep.subr.mxu0 0.0
    %290 = vmatpush1.msra.mxu0 %v244
    %291 = vmatprep.subr.mxu0 0.0
    %292 = vmatpush1.msra.mxu0 %v243
    %293 = vmatprep.subr.mxu0 0.0
    %294 = vmatpush2.msra.mxu0 0.0
    %295 = vmatprep.subr.mxu0 0.0
    %296 = vmatpush2.msra.mxu0 0.0
    %297 = vmatprep.subr.mxu0 0.0
    %298 = vmatpush2.msra.mxu0 0.0
    %299 = vmatprep.subr.mxu0 0.0
    %300 = vmatpush2.msra.mxu0 0.0
    %301 = vmatprep.subr.mxu0 0.0
    %302 = vmatpush2.msra.mxu0 0.0
    %303 = vmatprep.subr.mxu0 0.0
    %304 = vmatpush2.msra.mxu0 0.0
    %305 = vmatprep.subr.mxu0 0.0
    %306 = vmatpush2.msra.mxu0 0.0
    %307 = vmatprep.subr.mxu0 0.0
    %308 = vmatpush2.msra.mxu0 0.0
    %309 = vmatprep.subr.mxu0 0.0
    %310 = vmatpush2.msra.mxu0 0.0
    %311 = vmatprep.subr.mxu0 0.0
    %312 = vmatpush2.msra.mxu0 0.0
    %313 = vmatprep.subr.mxu0 0.0
    %314 = vmatpush2.msra.mxu0 0.0
    %315 = vmatprep.subr.mxu0 0.0
    %316 = vmatpush2.msra.mxu0 0.0
    %317 = vmatprep.subr.mxu0 0.0
    %318 = vmatpush2.msra.mxu0 0.0
    %319 = vmatprep.subr.mxu0 0.0
    %320 = vmatpush2.msra.mxu0 0.0
    %321 = vmatprep.subr.mxu0 0.0
    %322 = vmatpush2.msra.mxu0 0.0
    %323 = vmatprep.subr.mxu0 0.0
    %324 = vmatpush2.msra.mxu0 0.0
    %325 = vmatprep.mubr.f32.mxu0 0.0
    %326 = vmatmul.mubr.f32.gmra.mxu0 %v256
    %v327 = vpop.f32.mrf.mxu0
    %v328 = vadd.f32 %v253, %v327
    %v329 = vpop.f32.mrf.mxu0
    %330 = vmatprep.mubr.f32.mxu0 0.0
    %331 = vmatmul.mubr.f32.gmra.mxu0 %v259
    %v332 = vpop.f32.mrf.mxu0
    %v333 = vadd.f32 %v253, %v332
    %v334 = vpop.f32.mrf.mxu0
    %335 = vdwg.mxu0
    %vm336 = vcmask 810752
    %v337 = vsel %vm336, %v134, -inf
    %338 = vmax.xlane.f32.xlu0 %v337
    %v339 = vpop.xlane.xlu0 %338
    %v340 = vsel %vm336, %v137, -inf
    %341 = vmax.xlane.f32.xlu0 %v340
    %v342 = vpop.xlane.xlu0 %341
    %v343 = vsub.f32 %v134, %v339
    %v344 = vsub.f32 %v137, %v342
    %v345 = vmul.f32 %v343, 1.442695
    %v346 = vpow.pop %v345
    %v347 = vmul.f32 %v344, 1.442695
    %v348 = vpow.pop %v347
    %351 = vrot.lane.b32.xlu0 %v346, 32
    %v352 = vpop.permute.xlu0 %351
    %353 = vrot.lane.b32.xlu0 %v348, 32
    %v354 = vpop.permute.xlu0 %353
    %vm357 = vcmask 23552
    %v358 = vsel %vm357, %v352, 0.0
    %359 = vadd.xlane.f32.xlu0 %v358
    %v360 = vpop.xlane.xlu0 %359
    %v361 = vsel %vm357, %v354, 0.0
    %362 = vadd.xlane.f32.xlu0 %v361
    %v363 = vpop.xlane.xlu0 %362
    %v364 = vrcp.pop %v360
    %v365 = vrcp.pop %v363
    %v366 = vmul.f32 %v346, %v364
    %v367 = vmul.f32 %v348, %v365
    %369 = vset.pattern.permute.xlu0 96
    %370 = vperm.xlu0 %369, %v366
    %v371 = vpop.permute.xlu0 %370
    %374 = vset.pattern.permute.xlu0 96
    %375 = vperm.xlu0 %374, %v367
    %v376 = vpop.permute.xlu0 %375
    %v378 = vmul.f32 %v371, %v328
    %v379 = vmul.f32 %v376, %v333
    %380 = vset.pattern.permute.xlu0 97
    %381 = vperm.xlu0 %380, %v366
    %v382 = vpop.permute.xlu0 %381
    %384 = vset.pattern.permute.xlu0 97
    %385 = vperm.xlu0 %384, %v367
    %v386 = vpop.permute.xlu0 %385
    %v388 = vmul.f32 %v382, %v328
    %v389 = vmul.f32 %v386, %v333
    %392 = vrot.lane.b32.xlu0 %v388, 120
    %v393 = vpop.permute.xlu0 %392
    %394 = vrot.lane.b32.xlu0 %v389, 120
    %v395 = vpop.permute.xlu0 %394
    %v398 = vadd.f32 %v378, %v393
    %v399 = vadd.f32 %v379, %v395
    %400 = vset.pattern.permute.xlu0 98
    %401 = vperm.xlu0 %400, %v366
    %v402 = vpop.permute.xlu0 %401
    %404 = vset.pattern.permute.xlu0 98
    %405 = vperm.xlu0 %404, %v367
    %v406 = vpop.permute.xlu0 %405
    %v408 = vmul.f32 %v402, %v328
    %v409 = vmul.f32 %v406, %v333
    %412 = vrot.lane.b32.xlu0 %v408, 112
    %v413 = vpop.permute.xlu0 %412
    %414 = vrot.lane.b32.xlu0 %v409, 112
    %v415 = vpop.permute.xlu0 %414
    %v418 = vadd.f32 %v398, %v413
    %v419 = vadd.f32 %v399, %v415
    %v420 = vpack.c.bf16 %v367, %v366
    %v422 = vunpack.c.l.b16 %v420
    %v423 = vunpack.c.h.b16 %v420
    %v424 = vpack.c.b16 %v422, %v422
    %v425 = vpack.c.b16 %v423, %v423
    %426 = vrot.lane.b32.xlu0 %v424, 32
    %v427 = vpop.permute.xlu0 %426
    %428 = vrot.lane.b32.xlu0 %v425, 32
    %v429 = vpop.permute.xlu0 %428
    %vm432 = vcmask 19456
    %433 = vst.msk [vmem:[#allocation2] sm:$0xf] %vm432, %v427
    %434 = vst.msk [vmem:[#allocation2 + $0x4] sm:$0xf] %vm432, %v429
    %v435 = vpack.c.bf16 %v419, %v418
    %v437 = vunpack.c.l.b16 %v435
    %v438 = vunpack.c.h.b16 %v435
    %v439 = vpack.c.b16 %v437, %v437
    %v440 = vpack.c.b16 %v438, %v438
    %441 = vrot.lane.b32.xlu0 %v439, 3
    %v442 = vpop.permute.xlu0 %441
    %443 = vrot.lane.b32.xlu0 %v440, 3
    %v444 = vpop.permute.xlu0 %443
    %vm447 = vcmask 85016
    %448 = vst.msk [vmem:[#allocation2] sm:$0xf] %vm447, %v442
    %449 = vst.msk [vmem:[#allocation2 + $0x4] sm:$0xf] %vm447, %v444
    // Predicated region
    $region22: #{tpu_custom_call.1} parent=1 // pred_check
      _
    $region23: #{tpu_custom_call.1} parent=1 // pred_check_branch
      %451 = sbr.rel (0) target = $region25
    $region24: #{tpu_custom_call.1} parent=1 // pred_region
      %s453 = ssub.s32 128, 128
      %454 = vsyncadd [#allocation3], %s453
      %s455 = sshll.u32 [#allocation2], 4
      %s456 = int_to_ptr.vmem [resolvable:$true] %s455
      %461 = dma.vmem_to_hbm [thread:$0]  %s456, 128, %s5, [#allocation3], 64, 64, 4
    $region25: #{tpu_custom_call.1} parent=1 // pred_fallthru
      _
    // Predicated region
    $region26: #{tpu_custom_call.1} parent=1 // pred_check
      _
    $region27: #{tpu_custom_call.1} parent=1 // pred_check_branch
      %463 = sbr.rel (0) target = $region29
    $region28: #{tpu_custom_call.1} parent=1 // pred_region
      %464 = dma.done [#allocation3], 128
    $region29: #{tpu_custom_call.1} parent=1 // pred_fallthru
      _
    %465 = vsyncpa [#allocation3], 1

</llo_original>
